<compile_context>
chip_gen: v6e
topology: v6e:2x2x1
jax: 0.10.0
libtpu: 0.0.40
codegen_flags: <defaults>
</compile_context>

<pallas_src>
import jax
import jax.numpy as jnp
from jax.experimental import pallas as pl
from jax.experimental.pallas import tpu as pltpu


def adv_net_kernel(x_ref, w1_ref, b1_ref, w2_ref, b2_ref, w3_ref, b3_ref, o_ref):
    # --- F.normalize(x, p=2, dim=1): upcast to f32, rsqrt on the EUP ---
    x = x_ref[...].astype(jnp.float32)
    sq = jnp.sum(x * x, axis=1, keepdims=True)
    inv_norm = jax.lax.rsqrt(jnp.maximum(sq, 1e-24))  # 1 / max(||x||, 1e-12)
    xn = x * inv_norm

    # --- ad_layer1 + ReLU (dropout1 = identity in eval); MXU matmul, f32 accum ---
    h1 = jnp.dot(xn.astype(w1_ref.dtype), w1_ref[...],
                 preferred_element_type=jnp.float32) + b1_ref[...]
    h1 = jnp.maximum(h1, 0.0)

    # --- ad_layer2 + ReLU (dropout2 = identity in eval); MXU matmul, f32 accum ---
    h2 = jnp.dot(h1.astype(w2_ref.dtype), w2_ref[...],
                 preferred_element_type=jnp.float32) + b2_ref[...]
    h2 = jnp.maximum(h2, 0.0)

    # --- ad_layer3 + sigmoid, computed directly in lane-dense (1, tb) form ---
    # (1, H) x (tb, H) contracted over H -> (1, tb); avoids a (tb, 1) sublane-
    # sparse result and the masked partial stores it would force.
    logit = jax.lax.dot_general(
        w3_ref[...], h2,
        dimension_numbers=(((1,), (1,)), ((), ())),
        preferred_element_type=jnp.float32,
    ) + b3_ref[0, 0]
    o_ref[...] = jax.nn.sigmoid(logit).astype(o_ref.dtype)


def _round_up(n, m):
    return ((n + m - 1) // m) * m


def _vmem_limit_bytes(tb, in_feature, hidden, weight_bytes):
    resident = (in_feature * hidden + hidden * hidden) * weight_bytes   # single-buffered W1, W2
    resident += (3 * hidden + 1) * 4                                    # b1, b2, w3 row, b3 (f32)
    streamed = 2 * tb * in_feature * weight_bytes                       # double-buffered x tile
    streamed += 2 * tb * 4                                              # double-buffered out tile
    est = resident + streamed
    # 2x headroom + 4 MiB slack for compiler-internal scratch; clamp to [16, 64] MiB
    # (64 MiB = v7x per-TC VMEM; well above v5e's 16 MiB default scoped limit).
    return int(min(max(2 * est + (4 << 20), 16 << 20), 64 << 20))


def adversarial_network_forward(x, w1, b1, w2, b2, w3, b3, *, tb=None,
                                weights_dtype=jnp.bfloat16):
    """x: (B, in_feature). w1: (in_feature, H), w2: (H, H), w3: (H, 1), biases 1-D.

    Weights are stored transposed vs. PyTorch (in, out) so the kernel computes
    x @ W + b directly. Returns sigmoid output of shape (B, 1), float32.
    """
    B, in_feature = x.shape
    hidden = w1.shape[1]

    # --- batch-tile selection --------------------------------------------------
    # n_tiles > 1 requires tb to be a multiple of 128 (lane-dense output blocks).
    if tb is None:
        if B <= 128:
            tb = _round_up(B, 8)      # single tile for tiny batches
        elif B <= 1024:
            tb = 128                  # >=2 grid points so v7x megacore actually splits
        else:
            tb = 256                  # fill the 256-wide MXU on v6e / v7x
    n_tiles = pl.cdiv(B, tb)
    if n_tiles > 1 and tb % 128 != 0:
        raise ValueError("tb must be a multiple of 128 when the batch spans multiple tiles")
    B_pad = n_tiles * tb
    if B_pad != B:
        x = jnp.pad(x, ((0, B_pad - B), (0, 0)))

    # --- operand prep ----------------------------------------------------------
    weight_bytes = jnp.dtype(weights_dtype).itemsize
    x_in = x.astype(weights_dtype)                 # halves the recurring HBM read (bf16)
    w1_c = w1.astype(weights_dtype)
    w2_c = w2.astype(weights_dtype)
    b1_2d = b1.reshape(1, hidden).astype(jnp.float32)
    b2_2d = b2.reshape(1, hidden).astype(jnp.float32)
    w3_row = w3.reshape(1, hidden).astype(jnp.float32)
    b3_2d = b3.reshape(1, 1).astype(jnp.float32)   # SMEM scalar

    # Constant-index_map blocks: VMEM-resident across all batch tiles, single-buffered.
    def resident_spec(shape):
        return pl.BlockSpec(shape, lambda i: (0,) * len(shape),
                            pipeline_mode=pl.Buffered(buffer_count=1))

    out = pl.pallas_call(
        adv_net_kernel,
        out_shape=jax.ShapeDtypeStruct((1, B_pad), jnp.float32),
        grid=(n_tiles,),
        in_specs=[
            # x: one batch tile per grid step (default double-buffered pipeline).
            pl.BlockSpec((tb, in_feature), lambda i: (i, 0)),
            resident_spec((in_feature, hidden)),   # W1
            resident_spec((1, hidden)),            # b1
            resident_spec((hidden, hidden)),       # W2
            resident_spec((1, hidden)),            # b2
            resident_spec((1, hidden)),            # w3 row
            # b3 scalar lives in SMEM (no (1,1) VMEM tile).
            pl.BlockSpec(memory_space=pltpu.MemorySpace.SMEM),
        ],
        # Lane-dense output: each grid step writes one dense (1, tb) lane block.
        out_specs=pl.BlockSpec((1, tb), lambda i: (0, i)),
        compiler_params=pltpu.CompilerParams(
            dimension_semantics=("parallel",),  # megacore split on v7x
            vmem_limit_bytes=_vmem_limit_bytes(tb, in_feature, hidden, weight_bytes),
        ),
    )(x_in, w1_c, b1_2d, w2_c, b2_2d, w3_row, b3_2d)

    return out[0, :B].reshape(B, 1)


def init_params(key, in_feature, hidden_size):
    """Deterministic kaiming_normal-style init for the three Linear layers."""
    k1, k2, k3 = jax.random.split(key, 3)
    w1 = jax.random.normal(k1, (in_feature, hidden_size), jnp.float32) * jnp.sqrt(2.0 / in_feature)
    b1 = jnp.zeros((hidden_size,), jnp.float32)
    w2 = jax.random.normal(k2, (hidden_size, hidden_size), jnp.float32) * jnp.sqrt(2.0 / hidden_size)
    b2 = jnp.zeros((hidden_size,), jnp.float32)
    w3 = jax.random.normal(k3, (hidden_size, 1), jnp.float32) * jnp.sqrt(2.0 / hidden_size)
    b3 = jnp.zeros((1,), jnp.float32)
    return w1, b1, w2, b2, w3, b3


if __name__ == "__main__":
    B, in_feature, hidden_size = 8, 32, 32

    key = jax.random.PRNGKey(0)
    kx, kp = jax.random.split(key)
    x = jax.random.normal(kx, (B, in_feature), jnp.float32)
    w1, b1, w2, b2, w3, b3 = init_params(kp, in_feature, hidden_size)

    out = adversarial_network_forward(x, w1, b1, w2, b2, w3, b3)
    out = jax.block_until_ready(out)

    # Pure-JAX f32 reference of the same forward math (kernel uses bf16 matmul
    # inputs with f32 accumulation, hence the slightly loosened tolerance).
    xn = x / jnp.maximum(jnp.linalg.norm(x, axis=1, keepdims=True), 1e-12)
    h1 = jnp.maximum(xn @ w1 + b1, 0.0)
    h2 = jnp.maximum(h1 @ w2 + b2, 0.0)
    ref = jax.nn.sigmoid(h2 @ w3 + b3)

    assert out.shape == (B, 1)
    assert jnp.all(jnp.isfinite(out))
    assert jnp.allclose(out, ref, atol=2e-2, rtol=2e-2)

    print("KERNEL_OK")
</pallas_src>

<mosaic_0001>
module attributes {stable_mosaic.version = 11 : i64} {
  func.func @adv_net_kernel(%arg0: i32, %arg1: memref<8x32xbf16, #tpu.memory_space<vmem>>, %arg2: memref<32x32xbf16, #tpu.memory_space<vmem>>, %arg3: memref<1x32xf32, #tpu.memory_space<vmem>>, %arg4: memref<32x32xbf16, #tpu.memory_space<vmem>>, %arg5: memref<1x32xf32, #tpu.memory_space<vmem>>, %arg6: memref<1x32xf32, #tpu.memory_space<vmem>>, %arg7: memref<1x1xf32, #tpu.memory_space<smem>>, %arg8: memref<1x8xf32, #tpu.memory_space<vmem>>) attributes {dimension_semantics = [#tpu.dimension_semantics<parallel>], iteration_bounds = array<i64: 1>, scalar_prefetch = 0 : i64, scratch_operands = 0 : i64, tpu.core_type = #tpu.core_type<tc>, window_params = [{transform_indices = @transform_0, window_bounds = array<i64: 8, 32>}, {pipeline_mode = #tpu.pipeline_mode<synchronous>, transform_indices = @transform_1, window_bounds = array<i64: 32, 32>}, {pipeline_mode = #tpu.pipeline_mode<synchronous>, transform_indices = @transform_2, window_bounds = array<i64: 1, 32>}, {pipeline_mode = #tpu.pipeline_mode<synchronous>, transform_indices = @transform_3, window_bounds = array<i64: 32, 32>}, {pipeline_mode = #tpu.pipeline_mode<synchronous>, transform_indices = @transform_4, window_bounds = array<i64: 1, 32>}, {pipeline_mode = #tpu.pipeline_mode<synchronous>, transform_indices = @transform_5, window_bounds = array<i64: 1, 32>}, {transform_indices = @transform_6, window_bounds = array<i64: 1, 1>}, {transform_indices = @transform_7, window_bounds = array<i64: 1, 8>}]} {
    %c0 = arith.constant 0 : index
    %c0_0 = arith.constant 0 : index
    %0 = vector.load %arg1[%c0, %c0_0] : memref<8x32xbf16, #tpu.memory_space<vmem>>, vector<8x32xbf16>
    %1 = arith.extf %0 : vector<8x32xbf16> to vector<8x32xf32>
    %2 = arith.mulf %1, %1 : vector<8x32xf32>
    %cst = arith.constant dense<0.000000e+00> : vector<8xf32>
    %3 = vector.multi_reduction <add>, %2, %cst [1] : vector<8x32xf32> to vector<8xf32>
    %4 = vector.shape_cast %3 : vector<8xf32> to vector<8x1xf32>
    %cst_1 = arith.constant 1.000000e-24 : f32
    %5 = vector.broadcast %cst_1 : f32 to vector<8x1xf32>
    %6 = arith.maximumf %4, %5 : vector<8x1xf32>
    %7 = math.rsqrt %6 : vector<8x1xf32>
    %8 = vector.broadcast %7 : vector<8x1xf32> to vector<8x32xf32>
    %9 = arith.mulf %1, %8 : vector<8x32xf32>
    %10 = arith.truncf %9 : vector<8x32xf32> to vector<8x32xbf16>
    %c0_2 = arith.constant 0 : index
    %c0_3 = arith.constant 0 : index
    %11 = vector.load %arg2[%c0_2, %c0_3] : memref<32x32xbf16, #tpu.memory_space<vmem>>, vector<32x32xbf16>
    %cst_4 = arith.constant dense<0.000000e+00> : vector<8x32xf32>
    %12 = tpu.matmul %10, %11, %cst_4 {dimension_numbers = #tpu.dot_dimension_numbers<[1], [0], [0], [1], [0, 0, 1, 1], [], []>} : vector<8x32xbf16>, vector<32x32xbf16>, vector<8x32xf32> -> vector<8x32xf32>
    %c0_5 = arith.constant 0 : index
    %c0_6 = arith.constant 0 : index
    %13 = vector.load %arg3[%c0_5, %c0_6] : memref<1x32xf32, #tpu.memory_space<vmem>>, vector<1x32xf32>
    %14 = vector.broadcast %13 : vector<1x32xf32> to vector<8x32xf32>
    %15 = arith.addf %12, %14 : vector<8x32xf32>
    %cst_7 = arith.constant 0.000000e+00 : f32
    %16 = vector.broadcast %cst_7 : f32 to vector<8x32xf32>
    %17 = arith.maximumf %15, %16 : vector<8x32xf32>
    %18 = arith.truncf %17 : vector<8x32xf32> to vector<8x32xbf16>
    %c0_8 = arith.constant 0 : index
    %c0_9 = arith.constant 0 : index
    %19 = vector.load %arg4[%c0_8, %c0_9] : memref<32x32xbf16, #tpu.memory_space<vmem>>, vector<32x32xbf16>
    %cst_10 = arith.constant dense<0.000000e+00> : vector<8x32xf32>
    %20 = tpu.matmul %18, %19, %cst_10 {dimension_numbers = #tpu.dot_dimension_numbers<[1], [0], [0], [1], [0, 0, 1, 1], [], []>} : vector<8x32xbf16>, vector<32x32xbf16>, vector<8x32xf32> -> vector<8x32xf32>
    %c0_11 = arith.constant 0 : index
    %c0_12 = arith.constant 0 : index
    %21 = vector.load %arg5[%c0_11, %c0_12] : memref<1x32xf32, #tpu.memory_space<vmem>>, vector<1x32xf32>
    %22 = vector.broadcast %21 : vector<1x32xf32> to vector<8x32xf32>
    %23 = arith.addf %20, %22 : vector<8x32xf32>
    %cst_13 = arith.constant 0.000000e+00 : f32
    %24 = vector.broadcast %cst_13 : f32 to vector<8x32xf32>
    %25 = arith.maximumf %23, %24 : vector<8x32xf32>
    %c0_14 = arith.constant 0 : index
    %c0_15 = arith.constant 0 : index
    %26 = vector.load %arg6[%c0_14, %c0_15] : memref<1x32xf32, #tpu.memory_space<vmem>>, vector<1x32xf32>
    %cst_16 = arith.constant dense<0.000000e+00> : vector<1x8xf32>
    %27 = tpu.matmul %26, %25, %cst_16 {dimension_numbers = #tpu.dot_dimension_numbers<[1], [1], [0], [0], [0, 0, 1, 0], [], []>} : vector<1x32xf32>, vector<8x32xf32>, vector<1x8xf32> -> vector<1x8xf32>
    %c0_17 = arith.constant 0 : index
    %c0_18 = arith.constant 0 : index
    %28 = memref.load %arg7[%c0_17, %c0_18] : memref<1x1xf32, #tpu.memory_space<smem>>
    %29 = vector.broadcast %28 : f32 to vector<1x8xf32>
    %30 = arith.addf %27, %29 : vector<1x8xf32>
    %31 = arith.negf %30 : vector<1x8xf32>
    %32 = math.exp %31 : vector<1x8xf32>
    %cst_19 = arith.constant 1.000000e+00 : f32
    %33 = vector.broadcast %cst_19 : f32 to vector<1x8xf32>
    %34 = arith.addf %33, %32 : vector<1x8xf32>
    %35 = arith.divf %33, %34 : vector<1x8xf32>
    %c0_20 = arith.constant 0 : index
    %c0_21 = arith.constant 0 : index
    %36 = vector.load %arg8[%c0_20, %c0_21] : memref<1x8xf32, #tpu.memory_space<vmem>>, vector<1x8xf32>
    tpu.vector_store %arg8[%c0_20, %c0_21], %35 {strides = array<i32>} : memref<1x8xf32, #tpu.memory_space<vmem>>, vector<1x8xf32>,
    return
  }
  func.func @transform_0(%arg0: i32) -> (i32, i32) {
    %c0_i32 = arith.constant 0 : i32
    %c0_i32_0 = arith.constant 0 : i32
    return %arg0, %c0_i32 : i32, i32
  }
  func.func @transform_1(%arg0: i32) -> (i32, i32) {
    %c0_i32 = arith.constant 0 : i32
    %c0_i32_0 = arith.constant 0 : i32
    %c0_i32_1 = arith.constant 0 : i32
    return %c0_i32, %c0_i32_0 : i32, i32
  }
  func.func @transform_2(%arg0: i32) -> (i32, i32) {
    %c0_i32 = arith.constant 0 : i32
    %c0_i32_0 = arith.constant 0 : i32
    %c0_i32_1 = arith.constant 0 : i32
    return %c0_i32, %c0_i32_0 : i32, i32
  }
  func.func @transform_3(%arg0: i32) -> (i32, i32) {
    %c0_i32 = arith.constant 0 : i32
    %c0_i32_0 = arith.constant 0 : i32
    %c0_i32_1 = arith.constant 0 : i32
    return %c0_i32, %c0_i32_0 : i32, i32
  }
  func.func @transform_4(%arg0: i32) -> (i32, i32) {
    %c0_i32 = arith.constant 0 : i32
    %c0_i32_0 = arith.constant 0 : i32
    %c0_i32_1 = arith.constant 0 : i32
    return %c0_i32, %c0_i32_0 : i32, i32
  }
  func.func @transform_5(%arg0: i32) -> (i32, i32) {
    %c0_i32 = arith.constant 0 : i32
    %c0_i32_0 = arith.constant 0 : i32
    %c0_i32_1 = arith.constant 0 : i32
    return %c0_i32, %c0_i32_0 : i32, i32
  }
  func.func @transform_6(%arg0: i32) -> (i32, i32) {
    %c0_i32 = arith.constant 0 : i32
    %c0_i32_0 = arith.constant 0 : i32
    %c0_i32_1 = arith.constant 0 : i32
    return %c0_i32, %c0_i32_0 : i32, i32
  }
  func.func @transform_7(%arg0: i32) -> (i32, i32) {
    %c0_i32 = arith.constant 0 : i32
    %c0_i32_0 = arith.constant 0 : i32
    return %c0_i32, %arg0 : i32, i32
  }
}

</mosaic_0001>

<llo_original>
// kernel: tpu_custom_call.1
$region0: #{tpu_custom_call.1}
  #allocation0 [shape = 'u32[]', space=smem, size = 0x4, offset = 0x4, fixed_abs, tag = 'smem constant byte address 0x4 - core index']
  #allocation1 [shape = 'u32[144,128]{1,0:T(1,128)}', space=vmem, size = 0x12000, scoped, tag = 'internal scratch']
  #allocation2 [shape = 'f32[1,1]{1,0:T(1,128)S(6)}', space=smem, size = 0x200, scoped, tag = 'scoped memory for tpu_custom_call.1']
  %s0 = inlined_call_operand.hbm [shape: bf16[8,32], index: 0, kind: input, shape index: {}]
  %s1 = inlined_call_operand.hbm [shape: bf16[32,32], index: 1, kind: input, shape index: {}]
  %s2 = inlined_call_operand.vmem [shape: f32[1,32], index: 2, kind: input, shape index: {}]
  %s3 = inlined_call_operand.hbm [shape: bf16[32,32], index: 3, kind: input, shape index: {}]
  %s4 = inlined_call_operand.vmem [shape: f32[1,32], index: 4, kind: input, shape index: {}]
  %s5 = inlined_call_operand.vmem [shape: f32[1,32], index: 5, kind: input, shape index: {}]
  %s6 = inlined_call_operand.<no memory space> [shape: f32[1,1], index: 6, kind: input, shape index: {}]
  %s7 = inlined_call_operand.hbm [shape: f32[1,8], index: 7, kind: output, shape index: {}]
  %s8 = sld [smem:[#allocation0]]
  $region50: #{tpu_custom_call.1} parent=0
    _
  %s10 = ssub.s32 1, %s8
  %s11 = scalar_select 0, %s10, %s8
  %12 = sst [smem:[#allocation2]] %s6
  $region1: #{tpu_custom_call.1} parent=0
    #allocation3 [shape = 'u8[2048]{0}', space=vmem, size = 0x800, scoped, tag = 'input window, operand 0, single buffered']
    #allocation4 [shape = 's32[1]{0}', space=sflag, size = 0x4, scoped, tag = 'scoped memory for tpu_custom_call.1']
    #allocation5 [shape = 's32[1]{0}', space=sflag, size = 0x4, scoped, tag = 'scoped memory for tpu_custom_call.1']
    #allocation6 [shape = 'u8[8192]{0}', space=vmem, size = 0x2000, scoped, tag = 'input window, operand 1, single buffered']
    #allocation7 [shape = 's32[1]{0}', space=sflag, size = 0x4, scoped, tag = 'scoped memory for tpu_custom_call.1']
    #allocation8 [shape = 'u8[8192]{0}', space=vmem, size = 0x2000, scoped, tag = 'input window, operand 3, single buffered']
    #allocation9 [shape = 'u8[512]{0}', space=vmem, size = 0x400, scoped, tag = 'output window, operand 0, single buffered']
    %13 = vsyncpa [#allocation4], 0
    %14 = vsyncpa [#allocation7], 0
    %15 = vsyncpa [#allocation5], 0
    // Predicated region
    $region2: #{tpu_custom_call.1} parent=1 // pred_check
      _
    $region3: #{tpu_custom_call.1} parent=1 // pred_check_branch
      %17 = sbr.rel (0) target = $region5
    $region4: #{tpu_custom_call.1} parent=1 // pred_region
      %s19 = ssub.s32 64, 64
      %20 = vsyncadd [#allocation4], %s19
      %s22 = sshll.u32 [#allocation3], 4
      %s23 = int_to_ptr.vmem [resolvable:$true] %s22
      %25 = dma.hbm_to_vmem [thread:$0]  %s0, 64, %s23, [#allocation4]
    $region5: #{tpu_custom_call.1} parent=1 // pred_fallthru
      _
    // Predicated region
    $region6: #{tpu_custom_call.1} parent=1 // pred_check
      _
    $region7: #{tpu_custom_call.1} parent=1 // pred_check_branch
      %27 = sbr.rel (0) target = $region9
    $region8: #{tpu_custom_call.1} parent=1 // pred_region
      %s29 = ssub.s32 256, 256
      %30 = vsyncadd [#allocation7], %s29
      %s31 = sshll.u32 [#allocation6], 4
      %s32 = int_to_ptr.vmem [resolvable:$true] %s31
      %37 = dma.hbm_to_vmem [thread:$0]  %s1, 256, %s32, [#allocation7], 64, 64, 4
    $region9: #{tpu_custom_call.1} parent=1 // pred_fallthru
      _
    // Predicated region
    $region10: #{tpu_custom_call.1} parent=1 // pred_check
      _
    $region11: #{tpu_custom_call.1} parent=1 // pred_check_branch
      %39 = sbr.rel (0) target = $region13
    $region12: #{tpu_custom_call.1} parent=1 // pred_region
      _
    $region13: #{tpu_custom_call.1} parent=1 // pred_fallthru
      _
    // Predicated region
    $region14: #{tpu_custom_call.1} parent=1 // pred_check
      _
    $region15: #{tpu_custom_call.1} parent=1 // pred_check_branch
      %41 = sbr.rel (0) target = $region17
    $region16: #{tpu_custom_call.1} parent=1 // pred_region
      %s43 = ssub.s32 256, 256
      %44 = vsyncadd [#allocation7], %s43
      %s45 = sshll.u32 [#allocation8], 4
      %s46 = int_to_ptr.vmem [resolvable:$true] %s45
      %51 = dma.hbm_to_vmem [thread:$0]  %s3, 256, %s46, [#allocation7], 64, 64, 4
    $region17: #{tpu_custom_call.1} parent=1 // pred_fallthru
      _
    // Predicated region
    $region18: #{tpu_custom_call.1} parent=1 // pred_check
      _
    $region19: #{tpu_custom_call.1} parent=1 // pred_check_branch
      %53 = sbr.rel (0) target = $region21
    $region20: #{tpu_custom_call.1} parent=1 // pred_region
      _
    $region21: #{tpu_custom_call.1} parent=1 // pred_fallthru
      _
    // Predicated region
    $region22: #{tpu_custom_call.1} parent=1 // pred_check
      _
    $region23: #{tpu_custom_call.1} parent=1 // pred_check_branch
      %55 = sbr.rel (0) target = $region25
    $region24: #{tpu_custom_call.1} parent=1 // pred_region
      _
    $region25: #{tpu_custom_call.1} parent=1 // pred_fallthru
      _
    // Predicated region
    $region26: #{tpu_custom_call.1} parent=1 // pred_check
      _
    $region27: #{tpu_custom_call.1} parent=1 // pred_check_branch
      %57 = sbr.rel (0) target = $region29
    $region28: #{tpu_custom_call.1} parent=1 // pred_region
      _
    $region29: #{tpu_custom_call.1} parent=1 // pred_fallthru
      _
    // Predicated region
    $region30: #{tpu_custom_call.1} parent=1 // pred_check
      _
    $region31: #{tpu_custom_call.1} parent=1 // pred_check_branch
      %59 = sbr.rel (0) target = $region33
    $region32: #{tpu_custom_call.1} parent=1 // pred_region
      %60 = dma.done [#allocation4], 64
    $region33: #{tpu_custom_call.1} parent=1 // pred_fallthru
      _
    // Predicated region
    $region34: #{tpu_custom_call.1} parent=1 // pred_check
      _
    $region35: #{tpu_custom_call.1} parent=1 // pred_check_branch
      %62 = sbr.rel (0) target = $region37
    $region36: #{tpu_custom_call.1} parent=1 // pred_region
      %63 = dma.done [#allocation7], 256
    $region37: #{tpu_custom_call.1} parent=1 // pred_fallthru
      _
    // Predicated region
    $region38: #{tpu_custom_call.1} parent=1 // pred_check
      _
    $region39: #{tpu_custom_call.1} parent=1 // pred_check_branch
      %65 = sbr.rel (0) target = $region41
    $region40: #{tpu_custom_call.1} parent=1 // pred_region
      %66 = dma.done [#allocation7], 256
    $region41: #{tpu_custom_call.1} parent=1 // pred_fallthru
      _
    %v68 = vld [vmem:[#allocation3] sm:$0xf]
    %v69 = vunpack.c.l.bf16 %v68
    %v70 = vmul.f32 %v69, %v69
    %vm71 = vcmask 261120
    %v72 = vsel %vm71, %v70, 0.0
    %73 = vadd.xlane.f32.xlu0 %v72
    %v74 = vpop.xlane.xlu0 %73
    %v75 = vmax.f32 %v74, 1e-24
    %v76 = vrsqrt.pop %v75
    %v77 = vmul.f32 %v69, %v76
    %v78 = vpack.c.bf16 %v77, %v77
    %v79 = vld [vmem:[#allocation6] sm:$0xf]
    %v80 = vld [vmem:[#allocation6 + $0x4] sm:$0xf]
    %v81 = vld [vmem:[#allocation6 + $0x8] sm:$0xf]
    %v82 = vld [vmem:[#allocation6 + $0xc] sm:$0xf]
    %v83 = vld [vmem:[%s2] sm:$0x1]
    %v85 = vlaneseq
    %v86 = vshrl.u32 %v85, 7
    %v87 = vsub.s32 0, %v86
    %v88 = vrot.slane %v83, %v87
    %v94 = vunpack.c.l.b16 %v79
    %v95 = vunpack.c.l.b16 %v80
    %v96 = vunpack.c.l.b16 %v81
    %v97 = vunpack.c.l.b16 %v82
    %v98 = vpack.c.b16 %v95, %v94
    %v99 = vpack.c.b16 %v97, %v96
    %v103 = vsel %vm71, %v78, 0
    %105 = vmatprep.subr.bf16.mxu0 0
    %106 = vmatpush1.bf16.msra.mxu0 0
    %107 = vmatprep.subr.bf16.mxu0 0
    %108 = vmatpush1.bf16.msra.mxu0 0
    %109 = vmatprep.subr.bf16.mxu0 0
    %110 = vmatpush1.bf16.msra.mxu0 0
    %111 = vmatprep.subr.bf16.mxu0 0
    %112 = vmatpush1.bf16.msra.mxu0 0
    %113 = vmatprep.subr.bf16.mxu0 0
    %114 = vmatpush1.bf16.msra.mxu0 0
    %115 = vmatprep.subr.bf16.mxu0 0
    %116 = vmatpush1.bf16.msra.mxu0 0
    %117 = vmatprep.subr.bf16.mxu0 0
    %118 = vmatpush1.bf16.msra.mxu0 %v99
    %119 = vmatprep.subr.bf16.mxu0 0
    %120 = vmatpush1.bf16.msra.mxu0 %v98
    %121 = vmatprep.subr.bf16.mxu0 0
    %122 = vmatpush2.bf16.msra.mxu0 0
    %123 = vmatprep.subr.bf16.mxu0 0
    %124 = vmatpush2.bf16.msra.mxu0 0
    %125 = vmatprep.subr.bf16.mxu0 0
    %126 = vmatpush2.bf16.msra.mxu0 0
    %127 = vmatprep.subr.bf16.mxu0 0
    %128 = vmatpush2.bf16.msra.mxu0 0
    %129 = vmatprep.subr.bf16.mxu0 0
    %130 = vmatpush2.bf16.msra.mxu0 0
    %131 = vmatprep.subr.bf16.mxu0 0
    %132 = vmatpush2.bf16.msra.mxu0 0
    %133 = vmatprep.subr.bf16.mxu0 0
    %134 = vmatpush2.bf16.msra.mxu0 0
    %135 = vmatprep.subr.bf16.mxu0 0
    %136 = vmatpush2.bf16.msra.mxu0 0
    %137 = vmatprep.mubr.bf16.mxu0 0
    %138 = vmatmul.mubr.bf16.gmra.mxu0 %v103
    %v139 = vpop.f32.mrf.mxu0
    %v140 = vadd.f32 %v88, %v139
    %v141 = vpop.f32.mrf.mxu0
    %v142 = vpop.f32.mrf.mxu0
    %v143 = vpop.f32.mrf.mxu0
    %144 = vdwg.mxu0
    %v145 = vmax.f32 %v140, 0.0
    %v146 = vpack.c.bf16 %v145, %v145
    %v147 = vld [vmem:[#allocation8] sm:$0xf]
    %v148 = vld [vmem:[#allocation8 + $0x4] sm:$0xf]
    %v149 = vld [vmem:[#allocation8 + $0x8] sm:$0xf]
    %v150 = vld [vmem:[#allocation8 + $0xc] sm:$0xf]
    %v151 = vld [vmem:[%s4] sm:$0x1]
    %v153 = vlaneseq
    %v154 = vshrl.u32 %v153, 7
    %v155 = vsub.s32 0, %v154
    %v156 = vrot.slane %v151, %v155
    %v162 = vunpack.c.l.b16 %v147
    %v163 = vunpack.c.l.b16 %v148
    %v164 = vunpack.c.l.b16 %v149
    %v165 = vunpack.c.l.b16 %v150
    %v166 = vpack.c.b16 %v163, %v162
    %v167 = vpack.c.b16 %v165, %v164
    %v171 = vsel %vm71, %v146, 0
    %173 = vmatprep.subr.bf16.mxu0 0
    %174 = vmatpush1.bf16.msra.mxu0 0
    %175 = vmatprep.subr.bf16.mxu0 0
    %176 = vmatpush1.bf16.msra.mxu0 0
    %177 = vmatprep.subr.bf16.mxu0 0
    %178 = vmatpush1.bf16.msra.mxu0 0
    %179 = vmatprep.subr.bf16.mxu0 0
    %180 = vmatpush1.bf16.msra.mxu0 0
    %181 = vmatprep.subr.bf16.mxu0 0
    %182 = vmatpush1.bf16.msra.mxu0 0
    %183 = vmatprep.subr.bf16.mxu0 0
    %184 = vmatpush1.bf16.msra.mxu0 0
    %185 = vmatprep.subr.bf16.mxu0 0
    %186 = vmatpush1.bf16.msra.mxu0 %v167
    %187 = vmatprep.subr.bf16.mxu0 0
    %188 = vmatpush1.bf16.msra.mxu0 %v166
    %189 = vmatprep.subr.bf16.mxu0 0
    %190 = vmatpush2.bf16.msra.mxu0 0
    %191 = vmatprep.subr.bf16.mxu0 0
    %192 = vmatpush2.bf16.msra.mxu0 0
    %193 = vmatprep.subr.bf16.mxu0 0
    %194 = vmatpush2.bf16.msra.mxu0 0
    %195 = vmatprep.subr.bf16.mxu0 0
    %196 = vmatpush2.bf16.msra.mxu0 0
    %197 = vmatprep.subr.bf16.mxu0 0
    %198 = vmatpush2.bf16.msra.mxu0 0
    %199 = vmatprep.subr.bf16.mxu0 0
    %200 = vmatpush2.bf16.msra.mxu0 0
    %201 = vmatprep.subr.bf16.mxu0 0
    %202 = vmatpush2.bf16.msra.mxu0 0
    %203 = vmatprep.subr.bf16.mxu0 0
    %204 = vmatpush2.bf16.msra.mxu0 0
    %205 = vmatprep.mubr.bf16.mxu0 0
    %206 = vmatmul.mubr.bf16.gmra.mxu0 %v171
    %v207 = vpop.f32.mrf.mxu0
    %v208 = vadd.f32 %v156, %v207
    %v209 = vpop.f32.mrf.mxu0
    %v210 = vpop.f32.mrf.mxu0
    %v211 = vpop.f32.mrf.mxu0
    %212 = vdwg.mxu0
    %v213 = vmax.f32 %v208, 0.0
    %v214 = vld [vmem:[%s5] sm:$0x1]
    %s215 = sld [smem:[#allocation2]]
    %v216 = vstv %s215
    %v218 = vsel %vm71, %v214, 0
    %v221 = vsel %vm71, %v213, 0
    %223 = vmatprep.subr.mxu0 0.0
    %224 = vmatpush1.xpose.msra.mxu0 0.0
    %225 = vmatprep.subr.mxu0 0.0
    %226 = vmatpush1.xpose.msra.mxu0 0.0
    %227 = vmatprep.subr.mxu0 0.0
    %228 = vmatpush1.xpose.msra.mxu0 0.0
    %229 = vmatprep.subr.mxu0 0.0
    %230 = vmatpush1.xpose.msra.mxu0 0.0
    %231 = vmatprep.subr.mxu0 0.0
    %232 = vmatpush1.xpose.msra.mxu0 0.0
    %233 = vmatprep.subr.mxu0 0.0
    %234 = vmatpush1.xpose.msra.mxu0 0.0
    %235 = vmatprep.subr.mxu0 0.0
    %236 = vmatpush1.xpose.msra.mxu0 0.0
    %237 = vmatprep.subr.mxu0 0.0
    %238 = vmatpush1.xpose.msra.mxu0 0.0
    %239 = vmatprep.subr.mxu0 0.0
    %240 = vmatpush1.xpose.msra.mxu0 0.0
    %241 = vmatprep.subr.mxu0 0.0
    %242 = vmatpush1.xpose.msra.mxu0 0.0
    %243 = vmatprep.subr.mxu0 0.0
    %244 = vmatpush1.xpose.msra.mxu0 0.0
    %245 = vmatprep.subr.mxu0 0.0
    %246 = vmatpush1.xpose.msra.mxu0 0.0
    %247 = vmatprep.subr.mxu0 0.0
    %248 = vmatpush1.xpose.msra.mxu0 0.0
    %249 = vmatprep.subr.mxu0 0.0
    %250 = vmatpush1.xpose.msra.mxu0 0.0
    %251 = vmatprep.subr.mxu0 0.0
    %252 = vmatpush1.xpose.msra.mxu0 0.0
    %253 = vmatprep.subr.mxu0 0.0
    %254 = vmatpush1.xpose.msra.mxu0 %v221
    %255 = vmatprep.subr.mxu0 0.0
    %256 = vmatpush2.xpose.msra.mxu0 0.0
    %257 = vmatprep.subr.mxu0 0.0
    %258 = vmatpush2.xpose.msra.mxu0 0.0
    %259 = vmatprep.subr.mxu0 0.0
    %260 = vmatpush2.xpose.msra.mxu0 0.0
    %261 = vmatprep.subr.mxu0 0.0
    %262 = vmatpush2.xpose.msra.mxu0 0.0
    %263 = vmatprep.subr.mxu0 0.0
    %264 = vmatpush2.xpose.msra.mxu0 0.0
    %265 = vmatprep.subr.mxu0 0.0
    %266 = vmatpush2.xpose.msra.mxu0 0.0
    %267 = vmatprep.subr.mxu0 0.0
    %268 = vmatpush2.xpose.msra.mxu0 0.0
    %269 = vmatprep.subr.mxu0 0.0
    %270 = vmatpush2.xpose.msra.mxu0 0.0
    %271 = vmatprep.subr.mxu0 0.0
    %272 = vmatpush2.xpose.msra.mxu0 0.0
    %273 = vmatprep.subr.mxu0 0.0
    %274 = vmatpush2.xpose.msra.mxu0 0.0
    %275 = vmatprep.subr.mxu0 0.0
    %276 = vmatpush2.xpose.msra.mxu0 0.0
    %277 = vmatprep.subr.mxu0 0.0
    %278 = vmatpush2.xpose.msra.mxu0 0.0
    %279 = vmatprep.subr.mxu0 0.0
    %280 = vmatpush2.xpose.msra.mxu0 0.0
    %281 = vmatprep.subr.mxu0 0.0
    %282 = vmatpush2.xpose.msra.mxu0 0.0
    %283 = vmatprep.subr.mxu0 0.0
    %284 = vmatpush2.xpose.msra.mxu0 0.0
    %285 = vmatprep.subr.mxu0 0.0
    %286 = vmatpush2.xpose.msra.mxu0 0.0
    %287 = vmatprep.mubr.f32.mxu0 0.0
    %288 = vmatmul.mubr.f32.gmra.mxu0 %v218
    %v289 = vpop.f32.mrf.mxu0
    %v290 = vadd.f32 %v216, %v289
    %v291 = vpop.f32.mrf.mxu0
    %292 = vdwg.mxu0
    %v293 = vxor.u32 %v290, 2147483648
    %v294 = vmul.f32 %v293, 1.442695
    %v295 = vpow.pop %v294
    %v296 = vadd.f32 %v295, 1.0
    %v297 = vrcp.pop %v296
    %v298 = vmul.f32 1.0, %v297
    %vm299 = vcmask 57344
    %300 = vst.msk [vmem:[#allocation9] sm:$0x1] %vm299, %v298
    // Predicated region
    $region42: #{tpu_custom_call.1} parent=1 // pred_check
      _
    $region43: #{tpu_custom_call.1} parent=1 // pred_check_branch
      %302 = sbr.rel (0) target = $region45
    $region44: #{tpu_custom_call.1} parent=1 // pred_region
      %s304 = ssub.s32 16, 16
      %305 = vsyncadd [#allocation5], %s304
      %s307 = sshll.u32 [#allocation9], 4
      %s308 = int_to_ptr.vmem [resolvable:$true] %s307
      %310 = dma.vmem_to_hbm [thread:$0]  %s308, 16, %s7, [#allocation5]
    $region45: #{tpu_custom_call.1} parent=1 // pred_fallthru
      _
    // Predicated region
    $region46: #{tpu_custom_call.1} parent=1 // pred_check
      _
    $region47: #{tpu_custom_call.1} parent=1 // pred_check_branch
      %312 = sbr.rel (0) target = $region49
    $region48: #{tpu_custom_call.1} parent=1 // pred_region
      %313 = dma.done [#allocation5], 16
    $region49: #{tpu_custom_call.1} parent=1 // pred_fallthru
      _
    %314 = vsyncpa [#allocation4], 1
    %315 = vsyncpa [#allocation7], 1
    %316 = vsyncpa [#allocation5], 1

</llo_original>
